<compile_context>
chip_gen: v6e
topology: v6e:2x2x1
jax: 0.10.0
libtpu: 0.0.40
codegen_flags: <defaults>
</compile_context>

<pallas_src>
import functools
import math

import jax
import jax.numpy as jnp
from jax.experimental import pallas as pl
from jax.experimental.pallas import tpu as pltpu

dof = 3
STATE_DIM = dof * 2          # env.observation_space.shape[0]
ACTION_DIM = dof             # env.action_space.shape[0]
ACTION_BOUND = 1.0           # env.action_space.high[0]
HIDDEN_DIMS = (32, 32)       # hidden_dim list passed to the module
BATCH = 8
FEAT = 128                   # lane-padded feature width used for all matmuls
LP_OFF = FEAT // 2           # output lane offset of log_prob in the (B,128) slab

_LOG_SQRT_2PI = 0.5 * math.log(2.0 * math.pi)
_SOFTPLUS_THRESHOLD = 20.0


def _policy_kernel(explore, n_hidden, alpha_ref, x_ref, eps_ref, w_ref, out_ref):
    """One batch tile of the whole network; all weights resident in VMEM."""
    tb = x_ref.shape[0]

    # Widen x to the 128-lane matmul width in-register and append the constant-1
    # bias lane (lane FEAT-1).  NOTE: the bias-lane trick requires act(1) == 1;
    # PReLU satisfies this (1 > 0).  If the activation ever changes, switch to
    # explicit bias adds.
    h = jnp.concatenate(
        [x_ref[...],
         jnp.zeros((tb, FEAT - STATE_DIM - 1), jnp.float32),
         jnp.ones((tb, 1), jnp.float32)], axis=-1)

    # Hoisted PReLU slope broadcast (JAX does not CSE broadcast_in_dim).
    alpha_vec = jnp.full((tb, FEAT), alpha_ref[0], jnp.float32)

    for i in range(n_hidden):                        # static unroll over layers
        # bf16 weights, f32 activations/accumulation; bias folded into the dot.
        z = jnp.dot(h, w_ref[i], preferred_element_type=jnp.float32)
        h = jnp.where(z > 0.0, z, alpha_vec * z)     # PReLU; bias lane stays 1

    # mu head: weights only in output lanes [0, ACTION_DIM); other lanes are 0.
    mu = jnp.dot(h, w_ref[n_hidden], preferred_element_type=jnp.float32)

    # eps widened in-register (lanes >= ACTION_DIM are exactly zero).
    eps = jnp.concatenate(
        [eps_ref[...], jnp.zeros((tb, FEAT - ACTION_DIM), jnp.float32)], axis=-1)

    if explore:
        s = jnp.dot(h, w_ref[n_hidden + 1], preferred_element_type=jnp.float32)
        # torch.nn.functional.softplus (beta=1, threshold=20) + 1e-6
        sp = jnp.where(s > _SOFTPLUS_THRESHOLD, s,
                       jnp.log1p(jnp.exp(jnp.minimum(s, _SOFTPLUS_THRESHOLD))))
        std = sp + 1e-6
        sample = mu + eps * std                      # dist.rsample()
        # Normal(mu, std).log_prob(sample); (sample - mu)/std == eps exactly.
        log_prob = -0.5 * jnp.square(eps) - jnp.log(std) - _LOG_SQRT_2PI
    else:
        # std == 1e-6 constant -> log(std) folds into a compile-time constant.
        sample = mu + eps * 1e-6
        log_prob = -0.5 * jnp.square(eps) - (math.log(1e-6) + _LOG_SQRT_2PI)

    t = jnp.tanh(sample)
    # NOTE: reproduces the reference exactly: tanh applied again inside the
    # correction term (tanh(tanh(sample))).
    log_prob = log_prob - jnp.log(1.0 - jnp.square(jnp.tanh(t)) + 1e-7)
    action = t * ACTION_BOUND

    # Single lane-dense (tb, 128) store: action in lanes [0, A), log_prob in
    # lanes [LP_OFF, LP_OFF + A); remaining lanes are finite don't-care filler.
    out_ref[...] = jnp.concatenate([action[:, :LP_OFF], log_prob[:, :LP_OFF]],
                                   axis=-1)


def pack_params(raw):
    """Pack all Linear weights/biases into one (n_hidden+2, FEAT, FEAT) bf16 slab.

    Hidden layer i: W in slab[i, :in, :out], bias in row FEAT-1, and
    slab[i, FEAT-1, FEAT-1] = 1 so the constant-1 bias lane is carried forward.
    slab[n] is the mu head, slab[n+1] the std head; both write output lanes
    [0, ACTION_DIM) so the epilogue needs no lane realignment.
    """
    n = len(raw["hidden"])
    slab = jnp.zeros((n + 2, FEAT, FEAT), jnp.float32)
    for i, (w, b) in enumerate(raw["hidden"]):
        k, m = w.shape
        assert k < FEAT and m < FEAT, "feature dims must be < FEAT for packing"
        slab = slab.at[i, :k, :m].set(w)
        slab = slab.at[i, FEAT - 1, :m].set(b[0])
        slab = slab.at[i, FEAT - 1, FEAT - 1].set(1.0)   # carry the bias lane
    k = raw["w_mu"].shape[0]
    slab = slab.at[n, :k, :ACTION_DIM].set(raw["w_mu"])
    slab = slab.at[n, FEAT - 1, :ACTION_DIM].set(raw["b_mu"][0])
    slab = slab.at[n + 1, :k, :ACTION_DIM].set(raw["w_std"])
    slab = slab.at[n + 1, FEAT - 1, :ACTION_DIM].set(raw["b_std"][0])
    # bf16 storage halves the per-call weight DMA; values are already
    # bf16-representable (rounded at init), so this cast is lossless.
    return slab.astype(jnp.bfloat16)


@functools.partial(jax.jit, static_argnames=("explore",))
def policy_forward(x, slab, prelu_alpha, eps, explore=True):
    batch = x.shape[0]
    n_hidden = slab.shape[0] - 2

    # Batch tiling: one tile for small batches; 256-row tiles otherwise (fills
    # the 256-wide MXU rows on v6e/v7x; the parallel grid axis lets v7x's
    # second TensorCore run).
    # TODO(synk): pick 128-row tiles on v5e (its MXU is 128 wide).
    tb = batch if batch <= 256 else 256
    pad = (-batch) % tb
    if pad:
        x = jnp.concatenate([x, jnp.zeros((pad, STATE_DIM), x.dtype)], axis=0)
        eps = jnp.concatenate([eps, jnp.zeros((pad, ACTION_DIM), eps.dtype)], axis=0)
    n_tiles = pl.cdiv(batch + pad, tb)

    grid_spec = pltpu.PrefetchScalarGridSpec(
        num_scalar_prefetch=1,                       # prelu_alpha -> SMEM scalar
        grid=(n_tiles,),
        in_specs=[
            pl.BlockSpec((tb, STATE_DIM), lambda i, alpha: (i, 0)),
            pl.BlockSpec((tb, ACTION_DIM), lambda i, alpha: (i, 0)),
            # weight slab: constant index map -> resident across batch tiles.
            pl.BlockSpec((n_hidden + 2, FEAT, FEAT), lambda i, alpha: (0, 0, 0)),
        ],
        out_specs=pl.BlockSpec((tb, FEAT), lambda i, alpha: (i, 0)),
    )

    out = pl.pallas_call(
        functools.partial(_policy_kernel, explore, n_hidden),
        out_shape=jax.ShapeDtypeStruct((batch + pad, FEAT), jnp.float32),
        grid_spec=grid_spec,
        compiler_params=pltpu.CompilerParams(dimension_semantics=("parallel",)),
    )(prelu_alpha, x.astype(jnp.float32), eps.astype(jnp.float32), slab)

    return out[:batch, :ACTION_DIM], out[:batch, LP_OFF:LP_OFF + ACTION_DIM]


def _bf16_round(a):
    return a.astype(jnp.bfloat16).astype(jnp.float32)


def init_params(key):
    """Deterministic PyTorch-style init (uniform +/- 1/sqrt(fan_in)).

    Params are rounded to bf16-representable values so the bf16 weight slab
    used by the kernel and the f32 reference use identical numbers.
    """
    raw = {"hidden": []}
    prev = STATE_DIM
    for hdim in HIDDEN_DIMS:
        key, kw, kb = jax.random.split(key, 3)
        bound = 1.0 / math.sqrt(prev)
        w = _bf16_round(jax.random.uniform(kw, (prev, hdim), jnp.float32, -bound, bound))
        b = _bf16_round(jax.random.uniform(kb, (1, hdim), jnp.float32, -bound, bound))
        raw["hidden"].append((w, b))
        prev = hdim
    for name in ("mu", "std"):
        key, kw, kb = jax.random.split(key, 3)
        bound = 1.0 / math.sqrt(prev)
        raw[f"w_{name}"] = _bf16_round(jax.random.uniform(
            kw, (prev, ACTION_DIM), jnp.float32, -bound, bound))
        raw[f"b_{name}"] = _bf16_round(jax.random.uniform(
            kb, (1, ACTION_DIM), jnp.float32, -bound, bound))
    # torch.nn.PReLU() default: single shared parameter initialized to 0.25
    raw["prelu_alpha"] = jnp.array([0.25], dtype=jnp.float32)
    return raw


def _reference(x, raw, eps, explore):
    """Pure-JAX mirror of the PyTorch forward (for correctness checking).

    log_prob uses the algebraically exact (sample - mu)/std == eps form in both
    branches; the literal PyTorch re-computation differs from it only by fp
    cancellation noise, which for explore=False (std = 1e-6) is amplified by
    1e6 and dominates the literal value.
    """
    alpha = raw["prelu_alpha"][0]
    h = x
    for (w, b) in raw["hidden"]:
        z = h @ w + b
        h = jnp.where(z > 0.0, z, alpha * z)
    mu = h @ raw["w_mu"] + raw["b_mu"]
    if explore:
        s = h @ raw["w_std"] + raw["b_std"]
        sp = jnp.where(s > _SOFTPLUS_THRESHOLD, s,
                       jnp.log1p(jnp.exp(jnp.minimum(s, _SOFTPLUS_THRESHOLD))))
        std = sp + 1e-6
    else:
        std = jnp.full_like(mu, 1e-6)
    sample = mu + eps * std
    log_prob = -0.5 * jnp.square(eps) - jnp.log(std) - _LOG_SQRT_2PI
    action = jnp.tanh(sample)
    # double-tanh matches the original module exactly
    log_prob = log_prob - jnp.log(1.0 - jnp.square(jnp.tanh(action)) + 1e-7)
    return action * ACTION_BOUND, log_prob


if __name__ == "__main__":
    root = jax.random.PRNGKey(0)
    k_params, k_x, k_eps = jax.random.split(root, 3)

    raw = init_params(k_params)
    slab = pack_params(raw)
    x = jax.random.normal(k_x, (BATCH, STATE_DIM), jnp.float32)
    eps = jax.random.normal(k_eps, (BATCH, ACTION_DIM), jnp.float32)

    for explore in (True, False):
        action, log_prob = policy_forward(
            x, slab, raw["prelu_alpha"], eps, explore=explore)
        jax.block_until_ready((action, log_prob))

        assert action.shape == (BATCH, ACTION_DIM)
        assert log_prob.shape == (BATCH, ACTION_DIM)
        assert bool(jnp.all(jnp.isfinite(action)))
        assert bool(jnp.all(jnp.isfinite(log_prob)))

        ref_a, ref_lp = _reference(x, raw, eps, explore)
        assert bool(jnp.allclose(action, ref_a, rtol=5e-4, atol=5e-4)), explore
        assert bool(jnp.allclose(log_prob, ref_lp, rtol=5e-4, atol=5e-4)), explore

    print("KERNEL_OK")
</pallas_src>

<mosaic_0001>
module attributes {stable_mosaic.version = 11 : i64} {
  func.func @_policy_kernel(%arg0: i32, %arg1: memref<1xf32, #tpu.memory_space<smem>>, %arg2: memref<8x6xf32, #tpu.memory_space<vmem>>, %arg3: memref<8x3xf32, #tpu.memory_space<vmem>>, %arg4: memref<4x128x128xbf16, #tpu.memory_space<vmem>>, %arg5: memref<8x128xf32, #tpu.memory_space<vmem>>) attributes {dimension_semantics = [#tpu.dimension_semantics<parallel>], iteration_bounds = array<i64: 1>, scalar_prefetch = 1 : i64, scratch_operands = 0 : i64, tpu.core_type = #tpu.core_type<tc>, window_params = [{transform_indices = @transform_0, window_bounds = array<i64: 8, 6>}, {transform_indices = @transform_1, window_bounds = array<i64: 8, 3>}, {pipeline_mode = #tpu.pipeline_mode<synchronous>, transform_indices = @transform_2, window_bounds = array<i64: 4, 128, 128>}, {transform_indices = @transform_3, window_bounds = array<i64: 8, 128>}]} {
    %c0 = arith.constant 0 : index
    %c0_0 = arith.constant 0 : index
    %0 = vector.load %arg2[%c0, %c0_0] : memref<8x6xf32, #tpu.memory_space<vmem>>, vector<8x6xf32>
    %cst = arith.constant 0.000000e+00 : f32
    %1 = vector.broadcast %cst : f32 to vector<8x121xf32>
    %cst_1 = arith.constant 1.000000e+00 : f32
    %2 = vector.broadcast %cst_1 : f32 to vector<8x1xf32>
    %3 = tpu.concatenate %0, %1, %2 in 1 : vector<8x6xf32>, vector<8x121xf32>, vector<8x1xf32> -> vector<8x128xf32>
    %c0_2 = arith.constant 0 : index
    %4 = memref.load %arg1[%c0_2] : memref<1xf32, #tpu.memory_space<smem>>
    %5 = vector.broadcast %4 : f32 to vector<8x128xf32>
    %c0_3 = arith.constant 0 : index
    %c0_4 = arith.constant 0 : index
    %c0_5 = arith.constant 0 : index
    %6 = vector.load %arg4[%c0_3, %c0_4, %c0_5] : memref<4x128x128xbf16, #tpu.memory_space<vmem>>, vector<1x128x128xbf16>
    %7 = vector.shape_cast %6 : vector<1x128x128xbf16> to vector<128x128xbf16>
    %cst_6 = arith.constant dense<0.000000e+00> : vector<8x128xf32>
    %8 = tpu.matmul %3, %7, %cst_6 {dimension_numbers = #tpu.dot_dimension_numbers<[1], [0], [0], [1], [0, 0, 1, 1], [], []>} : vector<8x128xf32>, vector<128x128xbf16>, vector<8x128xf32> -> vector<8x128xf32>
    %cst_7 = arith.constant 0.000000e+00 : f32
    %9 = vector.broadcast %cst_7 : f32 to vector<8x128xf32>
    %10 = arith.cmpf ogt, %8, %9 : vector<8x128xf32>
    %11 = arith.mulf %5, %8 : vector<8x128xf32>
    %12 = arith.select %10, %8, %11 : vector<8x128xi1>, vector<8x128xf32>
    %c1 = arith.constant 1 : index
    %c0_8 = arith.constant 0 : index
    %c0_9 = arith.constant 0 : index
    %13 = vector.load %arg4[%c1, %c0_8, %c0_9] : memref<4x128x128xbf16, #tpu.memory_space<vmem>>, vector<1x128x128xbf16>
    %14 = vector.shape_cast %13 : vector<1x128x128xbf16> to vector<128x128xbf16>
    %cst_10 = arith.constant dense<0.000000e+00> : vector<8x128xf32>
    %15 = tpu.matmul %12, %14, %cst_10 {dimension_numbers = #tpu.dot_dimension_numbers<[1], [0], [0], [1], [0, 0, 1, 1], [], []>} : vector<8x128xf32>, vector<128x128xbf16>, vector<8x128xf32> -> vector<8x128xf32>
    %cst_11 = arith.constant 0.000000e+00 : f32
    %16 = vector.broadcast %cst_11 : f32 to vector<8x128xf32>
    %17 = arith.cmpf ogt, %15, %16 : vector<8x128xf32>
    %18 = arith.mulf %5, %15 : vector<8x128xf32>
    %19 = arith.select %17, %15, %18 : vector<8x128xi1>, vector<8x128xf32>
    %c2 = arith.constant 2 : index
    %c0_12 = arith.constant 0 : index
    %c0_13 = arith.constant 0 : index
    %20 = vector.load %arg4[%c2, %c0_12, %c0_13] : memref<4x128x128xbf16, #tpu.memory_space<vmem>>, vector<1x128x128xbf16>
    %21 = vector.shape_cast %20 : vector<1x128x128xbf16> to vector<128x128xbf16>
    %cst_14 = arith.constant dense<0.000000e+00> : vector<8x128xf32>
    %22 = tpu.matmul %19, %21, %cst_14 {dimension_numbers = #tpu.dot_dimension_numbers<[1], [0], [0], [1], [0, 0, 1, 1], [], []>} : vector<8x128xf32>, vector<128x128xbf16>, vector<8x128xf32> -> vector<8x128xf32>
    %c0_15 = arith.constant 0 : index
    %c0_16 = arith.constant 0 : index
    %23 = vector.load %arg3[%c0_15, %c0_16] : memref<8x3xf32, #tpu.memory_space<vmem>>, vector<8x3xf32>
    %cst_17 = arith.constant 0.000000e+00 : f32
    %24 = vector.broadcast %cst_17 : f32 to vector<8x125xf32>
    %25 = tpu.concatenate %23, %24 in 1 : vector<8x3xf32>, vector<8x125xf32> -> vector<8x128xf32>
    %c3 = arith.constant 3 : index
    %c0_18 = arith.constant 0 : index
    %c0_19 = arith.constant 0 : index
    %26 = vector.load %arg4[%c3, %c0_18, %c0_19] : memref<4x128x128xbf16, #tpu.memory_space<vmem>>, vector<1x128x128xbf16>
    %27 = vector.shape_cast %26 : vector<1x128x128xbf16> to vector<128x128xbf16>
    %cst_20 = arith.constant dense<0.000000e+00> : vector<8x128xf32>
    %28 = tpu.matmul %19, %27, %cst_20 {dimension_numbers = #tpu.dot_dimension_numbers<[1], [0], [0], [1], [0, 0, 1, 1], [], []>} : vector<8x128xf32>, vector<128x128xbf16>, vector<8x128xf32> -> vector<8x128xf32>
    %cst_21 = arith.constant 2.000000e+01 : f32
    %29 = vector.broadcast %cst_21 : f32 to vector<8x128xf32>
    %30 = arith.cmpf ogt, %28, %29 : vector<8x128xf32>
    %cst_22 = arith.constant 2.000000e+01 : f32
    %31 = vector.broadcast %cst_22 : f32 to vector<8x128xf32>
    %32 = arith.minimumf %28, %31 : vector<8x128xf32>
    %33 = math.exp %32 : vector<8x128xf32>
    %34 = math.log1p %33 : vector<8x128xf32>
    %35 = arith.select %30, %28, %34 : vector<8x128xi1>, vector<8x128xf32>
    %cst_23 = arith.constant 9.99999997E-7 : f32
    %36 = vector.broadcast %cst_23 : f32 to vector<8x128xf32>
    %37 = arith.addf %35, %36 : vector<8x128xf32>
    %38 = arith.mulf %25, %37 : vector<8x128xf32>
    %39 = arith.addf %22, %38 : vector<8x128xf32>
    %40 = arith.mulf %25, %25 : vector<8x128xf32>
    %cst_24 = arith.constant -5.000000e-01 : f32
    %41 = vector.broadcast %cst_24 : f32 to vector<8x128xf32>
    %42 = arith.mulf %41, %40 : vector<8x128xf32>
    %43 = math.log %37 : vector<8x128xf32>
    %44 = arith.subf %42, %43 : vector<8x128xf32>
    %cst_25 = arith.constant 0.918938517 : f32
    %45 = vector.broadcast %cst_25 : f32 to vector<8x128xf32>
    %46 = arith.subf %44, %45 : vector<8x128xf32>
    %47 = math.tanh %39 : vector<8x128xf32>
    %48 = math.tanh %47 : vector<8x128xf32>
    %49 = arith.mulf %48, %48 : vector<8x128xf32>
    %cst_26 = arith.constant 1.000000e+00 : f32
    %50 = vector.broadcast %cst_26 : f32 to vector<8x128xf32>
    %51 = arith.subf %50, %49 : vector<8x128xf32>
    %cst_27 = arith.constant 1.000000e-07 : f32
    %52 = vector.broadcast %cst_27 : f32 to vector<8x128xf32>
    %53 = arith.addf %51, %52 : vector<8x128xf32>
    %54 = math.log %53 : vector<8x128xf32>
    %55 = arith.subf %46, %54 : vector<8x128xf32>
    %cst_28 = arith.constant 1.000000e+00 : f32
    %56 = vector.broadcast %cst_28 : f32 to vector<8x128xf32>
    %57 = arith.mulf %47, %56 : vector<8x128xf32>
    %58 = vector.extract_strided_slice %57 {offsets = [0, 0], sizes = [8, 64], strides = [1, 1]} : vector<8x128xf32> to vector<8x64xf32>
    %59 = vector.extract_strided_slice %55 {offsets = [0, 0], sizes = [8, 64], strides = [1, 1]} : vector<8x128xf32> to vector<8x64xf32>
    %60 = tpu.concatenate %58, %59 in 1 : vector<8x64xf32>, vector<8x64xf32> -> vector<8x128xf32>
    %c0_29 = arith.constant 0 : index
    %c0_30 = arith.constant 0 : index
    %61 = vector.load %arg5[%c0_29, %c0_30] : memref<8x128xf32, #tpu.memory_space<vmem>>, vector<8x128xf32>
    tpu.vector_store %arg5[%c0_29, %c0_30], %60 {strides = array<i32>} : memref<8x128xf32, #tpu.memory_space<vmem>>, vector<8x128xf32>,
    return
  }
  func.func @transform_0(%arg0: i32, %arg1: memref<1xf32, #tpu.memory_space<smem>>) -> (i32, i32) {
    %c0_i32 = arith.constant 0 : i32
    %c0_i32_0 = arith.constant 0 : i32
    return %arg0, %c0_i32 : i32, i32
  }
  func.func @transform_1(%arg0: i32, %arg1: memref<1xf32, #tpu.memory_space<smem>>) -> (i32, i32) {
    %c0_i32 = arith.constant 0 : i32
    %c0_i32_0 = arith.constant 0 : i32
    return %arg0, %c0_i32 : i32, i32
  }
  func.func @transform_2(%arg0: i32, %arg1: memref<1xf32, #tpu.memory_space<smem>>) -> (i32, i32, i32) {
    %c0_i32 = arith.constant 0 : i32
    %c0_i32_0 = arith.constant 0 : i32
    %c0_i32_1 = arith.constant 0 : i32
    %c0_i32_2 = arith.constant 0 : i32
    return %c0_i32, %c0_i32_0, %c0_i32_1 : i32, i32, i32
  }
  func.func @transform_3(%arg0: i32, %arg1: memref<1xf32, #tpu.memory_space<smem>>) -> (i32, i32) {
    %c0_i32 = arith.constant 0 : i32
    %c0_i32_0 = arith.constant 0 : i32
    return %arg0, %c0_i32 : i32, i32
  }
}

</mosaic_0001>

<llo_original>
// kernel: policy_forward.1
$region0: #{policy_forward.1}
  #allocation0 [shape = 'u32[]', space=smem, size = 0x4, offset = 0x4, fixed_abs, tag = 'smem constant byte address 0x4 - core index']
  #allocation1 [shape = 'u32[144,128]{1,0:T(1,128)}', space=vmem, size = 0x12000, scoped, tag = 'internal scratch']
  #allocation2 [shape = 's32[1]{0}', space=sflag, size = 0x4, scoped, tag = 'scoped memory for policy_forward.1']
  #allocation3 [shape = 'f32[1]{0:T(128)S(6)}', space=smem, size = 0x200, scoped, tag = 'prefetched SMEM operand 0']
  %s0 = inlined_call_operand.<no memory space> [shape: f32[1], index: 0, kind: input, shape index: {}]
  %s1 = inlined_call_operand.vmem [shape: f32[8,6], index: 1, kind: input, shape index: {}]
  %s2 = inlined_call_operand.vmem [shape: f32[8,3], index: 2, kind: input, shape index: {}]
  %s3 = inlined_call_operand.hbm [shape: bf16[4,128,128], index: 3, kind: input, shape index: {}]
  %s4 = inlined_call_operand.vmem [shape: f32[8,128], index: 4, kind: output, shape index: {}]
  %s5 = sld [smem:[#allocation0]]
  $region26: #{policy_forward.1} parent=0
    _
  %s7 = ssub.s32 1, %s5
  %s8 = scalar_select 0, %s7, %s5
  %9 = sst [smem:[#allocation3]] %s0
  $region1: #{policy_forward.1} parent=0
    #allocation4 [shape = 'u8[131072]{0}', space=vmem, size = 0x20000, scoped, tag = 'input window, operand 3, single buffered']
    #allocation5 [shape = 's32[1]{0}', space=sflag, size = 0x4, scoped, tag = 'scoped memory for policy_forward.1']
    %10 = vsyncpa [#allocation5], 0
    // Predicated region
    $region2: #{policy_forward.1} parent=1 // pred_check
      _
    $region3: #{policy_forward.1} parent=1 // pred_check_branch
      %12 = sbr.rel (0) target = $region5
    $region4: #{policy_forward.1} parent=1 // pred_region
      _
    $region5: #{policy_forward.1} parent=1 // pred_fallthru
      _
    // Predicated region
    $region6: #{policy_forward.1} parent=1 // pred_check
      _
    $region7: #{policy_forward.1} parent=1 // pred_check_branch
      %14 = sbr.rel (0) target = $region9
    $region8: #{policy_forward.1} parent=1 // pred_region
      _
    $region9: #{policy_forward.1} parent=1 // pred_fallthru
      _
    // Predicated region
    $region10: #{policy_forward.1} parent=1 // pred_check
      _
    $region11: #{policy_forward.1} parent=1 // pred_check_branch
      %16 = sbr.rel (0) target = $region13
    $region12: #{policy_forward.1} parent=1 // pred_region
      %s18 = ssub.s32 4096, 4096
      %19 = vsyncadd [#allocation5], %s18
      %s20 = sshll.u32 [#allocation4], 4
      %s21 = int_to_ptr.vmem [resolvable:$true] %s20
      %26 = dma.hbm_to_vmem [thread:$0]  %s3, 4096, %s21, [#allocation5], 64, 64, 4
    $region13: #{policy_forward.1} parent=1 // pred_fallthru
      _
    // Predicated region
    $region14: #{policy_forward.1} parent=1 // pred_check
      _
    $region15: #{policy_forward.1} parent=1 // pred_check_branch
      %28 = sbr.rel (0) target = $region17
    $region16: #{policy_forward.1} parent=1 // pred_region
      %29 = dma.done [#allocation5], 4096
    $region17: #{policy_forward.1} parent=1 // pred_fallthru
      _
    %v31 = vld [vmem:[%s1] sm:$0xff]
    %vm32 = vcmask 48128
    %v33 = vsel %vm32, %v31, 0.0
    %vm34 = vcmask 1039360
    %v35 = vsel %vm34, %v33, 1.0
    %s36 = sld [smem:[#allocation3]]
    %v37 = vstv %s36
    %v38 = vld [vmem:[#allocation4] sm:$0xf]
    %v39 = vld [vmem:[#allocation4 + $0x4] sm:$0xf]
    %v40 = vld [vmem:[#allocation4 + $0x8] sm:$0xf]
    %v41 = vld [vmem:[#allocation4 + $0xc] sm:$0xf]
    %v42 = vld [vmem:[#allocation4 + $0x10] sm:$0xf]
    %v43 = vld [vmem:[#allocation4 + $0x14] sm:$0xf]
    %v44 = vld [vmem:[#allocation4 + $0x18] sm:$0xf]
    %v45 = vld [vmem:[#allocation4 + $0x1c] sm:$0xf]
    %v46 = vld [vmem:[#allocation4 + $0x20] sm:$0xf]
    %v47 = vld [vmem:[#allocation4 + $0x24] sm:$0xf]
    %v48 = vld [vmem:[#allocation4 + $0x28] sm:$0xf]
    %v49 = vld [vmem:[#allocation4 + $0x2c] sm:$0xf]
    %v50 = vld [vmem:[#allocation4 + $0x30] sm:$0xf]
    %v51 = vld [vmem:[#allocation4 + $0x34] sm:$0xf]
    %v52 = vld [vmem:[#allocation4 + $0x38] sm:$0xf]
    %v53 = vld [vmem:[#allocation4 + $0x3c] sm:$0xf]
    %v70 = vunpack.c.l.b16 %v38
    %v71 = vunpack.c.l.b16 %v39
    %v72 = vunpack.c.l.b16 %v40
    %v73 = vunpack.c.l.b16 %v41
    %v74 = vunpack.c.l.b16 %v42
    %v75 = vunpack.c.l.b16 %v43
    %v76 = vunpack.c.l.b16 %v44
    %v77 = vunpack.c.l.b16 %v45
    %v78 = vunpack.c.l.b16 %v46
    %v79 = vunpack.c.l.b16 %v47
    %v80 = vunpack.c.l.b16 %v48
    %v81 = vunpack.c.l.b16 %v49
    %v82 = vunpack.c.l.b16 %v50
    %v83 = vunpack.c.l.b16 %v51
    %v84 = vunpack.c.l.b16 %v52
    %v85 = vunpack.c.l.b16 %v53
    %v86 = vpack.c.b16 %v71, %v70
    %v87 = vpack.c.b16 %v73, %v72
    %v88 = vpack.c.b16 %v75, %v74
    %v89 = vpack.c.b16 %v77, %v76
    %v90 = vpack.c.b16 %v79, %v78
    %v91 = vpack.c.b16 %v81, %v80
    %v92 = vpack.c.b16 %v83, %v82
    %v93 = vpack.c.b16 %v85, %v84
    %102 = vmatprep.subr.bf16.mxu0 0
    %103 = vmatpush1.bf16.msra.mxu0 %v93
    %104 = vmatprep.subr.bf16.mxu0 0
    %105 = vmatpush1.bf16.msra.mxu0 %v92
    %106 = vmatprep.subr.bf16.mxu0 0
    %107 = vmatpush1.bf16.msra.mxu0 %v91
    %108 = vmatprep.subr.bf16.mxu0 0
    %109 = vmatpush1.bf16.msra.mxu0 %v90
    %110 = vmatprep.subr.bf16.mxu0 0
    %111 = vmatpush1.bf16.msra.mxu0 %v89
    %112 = vmatprep.subr.bf16.mxu0 0
    %113 = vmatpush1.bf16.msra.mxu0 %v88
    %114 = vmatprep.subr.bf16.mxu0 0
    %115 = vmatpush1.bf16.msra.mxu0 %v87
    %116 = vmatprep.subr.bf16.mxu0 0
    %117 = vmatpush1.bf16.msra.mxu0 %v86
    %118 = vmatprep.subr.bf16.mxu0 0
    %119 = vmatpush2.bf16.msra.mxu0 0
    %120 = vmatprep.subr.bf16.mxu0 0
    %121 = vmatpush2.bf16.msra.mxu0 0
    %122 = vmatprep.subr.bf16.mxu0 0
    %123 = vmatpush2.bf16.msra.mxu0 0
    %124 = vmatprep.subr.bf16.mxu0 0
    %125 = vmatpush2.bf16.msra.mxu0 0
    %126 = vmatprep.subr.bf16.mxu0 0
    %127 = vmatpush2.bf16.msra.mxu0 0
    %128 = vmatprep.subr.bf16.mxu0 0
    %129 = vmatpush2.bf16.msra.mxu0 0
    %130 = vmatprep.subr.bf16.mxu0 0
    %131 = vmatpush2.bf16.msra.mxu0 0
    %132 = vmatprep.subr.bf16.mxu0 0
    %133 = vmatpush2.bf16.msra.mxu0 0
    %134 = vmatprep.mubr.f32.mxu0 0.0
    %135 = vmatmul.mubr.f32.gmra.mxu0 %v35
    %v136 = vpop.f32.mrf.mxu0
    %v137 = vadd.f32 0.0, %v136
    %v138 = vpop.f32.mrf.mxu0
    %139 = vdwg.mxu0
    %vm140 = vcmp.gt.f32.partialorder %v137, 0.0
    %v141 = vmul.f32 %v37, %v137
    %v142 = vsel %vm140, %v137, %v141
    %s143 = scalar_lea.vmem [#allocation4], 64
    %v144 = vld [vmem:[%s143] sm:$0xf]
    %v145 = vld [vmem:[%s143 + $0x4] sm:$0xf]
    %v146 = vld [vmem:[%s143 + $0x8] sm:$0xf]
    %v147 = vld [vmem:[%s143 + $0xc] sm:$0xf]
    %v148 = vld [vmem:[%s143 + $0x10] sm:$0xf]
    %v149 = vld [vmem:[%s143 + $0x14] sm:$0xf]
    %v150 = vld [vmem:[%s143 + $0x18] sm:$0xf]
    %v151 = vld [vmem:[%s143 + $0x1c] sm:$0xf]
    %v152 = vld [vmem:[%s143 + $0x20] sm:$0xf]
    %v153 = vld [vmem:[%s143 + $0x24] sm:$0xf]
    %v154 = vld [vmem:[%s143 + $0x28] sm:$0xf]
    %v155 = vld [vmem:[%s143 + $0x2c] sm:$0xf]
    %v156 = vld [vmem:[%s143 + $0x30] sm:$0xf]
    %v157 = vld [vmem:[%s143 + $0x34] sm:$0xf]
    %v158 = vld [vmem:[%s143 + $0x38] sm:$0xf]
    %v159 = vld [vmem:[%s143 + $0x3c] sm:$0xf]
    %v176 = vunpack.c.l.b16 %v144
    %v177 = vunpack.c.l.b16 %v145
    %v178 = vunpack.c.l.b16 %v146
    %v179 = vunpack.c.l.b16 %v147
    %v180 = vunpack.c.l.b16 %v148
    %v181 = vunpack.c.l.b16 %v149
    %v182 = vunpack.c.l.b16 %v150
    %v183 = vunpack.c.l.b16 %v151
    %v184 = vunpack.c.l.b16 %v152
    %v185 = vunpack.c.l.b16 %v153
    %v186 = vunpack.c.l.b16 %v154
    %v187 = vunpack.c.l.b16 %v155
    %v188 = vunpack.c.l.b16 %v156
    %v189 = vunpack.c.l.b16 %v157
    %v190 = vunpack.c.l.b16 %v158
    %v191 = vunpack.c.l.b16 %v159
    %v192 = vpack.c.b16 %v177, %v176
    %v193 = vpack.c.b16 %v179, %v178
    %v194 = vpack.c.b16 %v181, %v180
    %v195 = vpack.c.b16 %v183, %v182
    %v196 = vpack.c.b16 %v185, %v184
    %v197 = vpack.c.b16 %v187, %v186
    %v198 = vpack.c.b16 %v189, %v188
    %v199 = vpack.c.b16 %v191, %v190
    %208 = vmatprep.subr.bf16.mxu0 0
    %209 = vmatpush1.bf16.msra.mxu0 %v199
    %210 = vmatprep.subr.bf16.mxu0 0
    %211 = vmatpush1.bf16.msra.mxu0 %v198
    %212 = vmatprep.subr.bf16.mxu0 0
    %213 = vmatpush1.bf16.msra.mxu0 %v197
    %214 = vmatprep.subr.bf16.mxu0 0
    %215 = vmatpush1.bf16.msra.mxu0 %v196
    %216 = vmatprep.subr.bf16.mxu0 0
    %217 = vmatpush1.bf16.msra.mxu0 %v195
    %218 = vmatprep.subr.bf16.mxu0 0
    %219 = vmatpush1.bf16.msra.mxu0 %v194
    %220 = vmatprep.subr.bf16.mxu0 0
    %221 = vmatpush1.bf16.msra.mxu0 %v193
    %222 = vmatprep.subr.bf16.mxu0 0
    %223 = vmatpush1.bf16.msra.mxu0 %v192
    %224 = vmatprep.subr.bf16.mxu0 0
    %225 = vmatpush2.bf16.msra.mxu0 0
    %226 = vmatprep.subr.bf16.mxu0 0
    %227 = vmatpush2.bf16.msra.mxu0 0
    %228 = vmatprep.subr.bf16.mxu0 0
    %229 = vmatpush2.bf16.msra.mxu0 0
    %230 = vmatprep.subr.bf16.mxu0 0
    %231 = vmatpush2.bf16.msra.mxu0 0
    %232 = vmatprep.subr.bf16.mxu0 0
    %233 = vmatpush2.bf16.msra.mxu0 0
    %234 = vmatprep.subr.bf16.mxu0 0
    %235 = vmatpush2.bf16.msra.mxu0 0
    %236 = vmatprep.subr.bf16.mxu0 0
    %237 = vmatpush2.bf16.msra.mxu0 0
    %238 = vmatprep.subr.bf16.mxu0 0
    %239 = vmatpush2.bf16.msra.mxu0 0
    %240 = vmatprep.mubr.f32.mxu0 0.0
    %241 = vmatmul.mubr.f32.gmra.mxu0 %v142
    %v242 = vpop.f32.mrf.mxu0
    %v243 = vadd.f32 0.0, %v242
    %v244 = vpop.f32.mrf.mxu0
    %245 = vdwg.mxu0
    %vm246 = vcmp.gt.f32.partialorder %v243, 0.0
    %v247 = vmul.f32 %v37, %v243
    %v248 = vsel %vm246, %v243, %v247
    %s249 = scalar_lea.vmem [#allocation4], 128
    %v250 = vld [vmem:[%s249] sm:$0xf]
    %v251 = vld [vmem:[%s249 + $0x4] sm:$0xf]
    %v252 = vld [vmem:[%s249 + $0x8] sm:$0xf]
    %v253 = vld [vmem:[%s249 + $0xc] sm:$0xf]
    %v254 = vld [vmem:[%s249 + $0x10] sm:$0xf]
    %v255 = vld [vmem:[%s249 + $0x14] sm:$0xf]
    %v256 = vld [vmem:[%s249 + $0x18] sm:$0xf]
    %v257 = vld [vmem:[%s249 + $0x1c] sm:$0xf]
    %v258 = vld [vmem:[%s249 + $0x20] sm:$0xf]
    %v259 = vld [vmem:[%s249 + $0x24] sm:$0xf]
    %v260 = vld [vmem:[%s249 + $0x28] sm:$0xf]
    %v261 = vld [vmem:[%s249 + $0x2c] sm:$0xf]
    %v262 = vld [vmem:[%s249 + $0x30] sm:$0xf]
    %v263 = vld [vmem:[%s249 + $0x34] sm:$0xf]
    %v264 = vld [vmem:[%s249 + $0x38] sm:$0xf]
    %v265 = vld [vmem:[%s249 + $0x3c] sm:$0xf]
    %v266 = vld [vmem:[%s2] sm:$0xff]
    %vm267 = vcmask 23552
    %v268 = vsel %vm267, %v266, 0.0
    %s269 = scalar_lea.vmem [#allocation4], 192
    %v270 = vld [vmem:[%s269] sm:$0xf]
    %v271 = vld [vmem:[%s269 + $0x4] sm:$0xf]
    %v272 = vld [vmem:[%s269 + $0x8] sm:$0xf]
    %v273 = vld [vmem:[%s269 + $0xc] sm:$0xf]
    %v274 = vld [vmem:[%s269 + $0x10] sm:$0xf]
    %v275 = vld [vmem:[%s269 + $0x14] sm:$0xf]
    %v276 = vld [vmem:[%s269 + $0x18] sm:$0xf]
    %v277 = vld [vmem:[%s269 + $0x1c] sm:$0xf]
    %v278 = vld [vmem:[%s269 + $0x20] sm:$0xf]
    %v279 = vld [vmem:[%s269 + $0x24] sm:$0xf]
    %v280 = vld [vmem:[%s269 + $0x28] sm:$0xf]
    %v281 = vld [vmem:[%s269 + $0x2c] sm:$0xf]
    %v282 = vld [vmem:[%s269 + $0x30] sm:$0xf]
    %v283 = vld [vmem:[%s269 + $0x34] sm:$0xf]
    %v284 = vld [vmem:[%s269 + $0x38] sm:$0xf]
    %v285 = vld [vmem:[%s269 + $0x3c] sm:$0xf]
    %v302 = vunpack.c.l.b16 %v270
    %v303 = vunpack.c.l.b16 %v271
    %v304 = vunpack.c.l.b16 %v272
    %v305 = vunpack.c.l.b16 %v273
    %v306 = vunpack.c.l.b16 %v274
    %v307 = vunpack.c.l.b16 %v275
    %v308 = vunpack.c.l.b16 %v276
    %v309 = vunpack.c.l.b16 %v277
    %v310 = vunpack.c.l.b16 %v278
    %v311 = vunpack.c.l.b16 %v279
    %v312 = vunpack.c.l.b16 %v280
    %v313 = vunpack.c.l.b16 %v281
    %v314 = vunpack.c.l.b16 %v282
    %v315 = vunpack.c.l.b16 %v283
    %v316 = vunpack.c.l.b16 %v284
    %v317 = vunpack.c.l.b16 %v285
    %v318 = vpack.c.b16 %v303, %v302
    %v319 = vpack.c.b16 %v305, %v304
    %v320 = vpack.c.b16 %v307, %v306
    %v321 = vpack.c.b16 %v309, %v308
    %v322 = vpack.c.b16 %v311, %v310
    %v323 = vpack.c.b16 %v313, %v312
    %v324 = vpack.c.b16 %v315, %v314
    %v325 = vpack.c.b16 %v317, %v316
    %334 = vmatprep.subr.bf16.mxu0 0
    %335 = vmatpush1.bf16.msra.mxu0 %v325
    %336 = vmatprep.subr.bf16.mxu0 0
    %337 = vmatpush1.bf16.msra.mxu0 %v324
    %338 = vmatprep.subr.bf16.mxu0 0
    %339 = vmatpush1.bf16.msra.mxu0 %v323
    %340 = vmatprep.subr.bf16.mxu0 0
    %341 = vmatpush1.bf16.msra.mxu0 %v322
    %342 = vmatprep.subr.bf16.mxu0 0
    %343 = vmatpush1.bf16.msra.mxu0 %v321
    %344 = vmatprep.subr.bf16.mxu0 0
    %345 = vmatpush1.bf16.msra.mxu0 %v320
    %346 = vmatprep.subr.bf16.mxu0 0
    %347 = vmatpush1.bf16.msra.mxu0 %v319
    %348 = vmatprep.subr.bf16.mxu0 0
    %349 = vmatpush1.bf16.msra.mxu0 %v318
    %350 = vmatprep.subr.bf16.mxu0 0
    %351 = vmatpush2.bf16.msra.mxu0 0
    %352 = vmatprep.subr.bf16.mxu0 0
    %353 = vmatpush2.bf16.msra.mxu0 0
    %354 = vmatprep.subr.bf16.mxu0 0
    %355 = vmatpush2.bf16.msra.mxu0 0
    %356 = vmatprep.subr.bf16.mxu0 0
    %357 = vmatpush2.bf16.msra.mxu0 0
    %358 = vmatprep.subr.bf16.mxu0 0
    %359 = vmatpush2.bf16.msra.mxu0 0
    %360 = vmatprep.subr.bf16.mxu0 0
    %361 = vmatpush2.bf16.msra.mxu0 0
    %362 = vmatprep.subr.bf16.mxu0 0
    %363 = vmatpush2.bf16.msra.mxu0 0
    %364 = vmatprep.subr.bf16.mxu0 0
    %365 = vmatpush2.bf16.msra.mxu0 0
    %366 = vmatprep.mubr.f32.mxu0 0.0
    %367 = vmatmul.mubr.f32.gmra.mxu0 %v248
    %v368 = vpop.f32.mrf.mxu0
    %v369 = vadd.f32 0.0, %v368
    %v370 = vpop.f32.mrf.mxu0
    %371 = vdwg.mxu0
    %vm372 = vcmp.gt.f32.partialorder %v369, 20.0
    %v373 = vmin.f32 %v369, 20.0
    %v374 = vmul.f32 %v373, 1.442695
    %v375 = vpow.pop %v374
    %v376 = vadd.f32 %v375, 1.0
    %v377 = vlog2.pop %v376
    %v378 = vmul.f32 %v377, 0.6931472
    %v379 = vmul.f32 -0.5, %v375
    %v380 = vadd.f32 %v379, 1.0
    %v381 = vmul.f32 %v380, %v375
    %v382 = vand.u32 2147483647, %v375
    %vm383 = vcmp.lt.f32.partialorder %v382, 0.0004427343
    %v384 = vsel %vm383, %v381, %v378
    %v385 = vsel %vm372, %v369, %v384
    %v386 = vadd.f32 %v385, 1e-06
    %v387 = vmul.f32 %v268, %v386
    %v404 = vunpack.c.l.b16 %v250
    %v405 = vunpack.c.l.b16 %v251
    %v406 = vunpack.c.l.b16 %v252
    %v407 = vunpack.c.l.b16 %v253
    %v408 = vunpack.c.l.b16 %v254
    %v409 = vunpack.c.l.b16 %v255
    %v410 = vunpack.c.l.b16 %v256
    %v411 = vunpack.c.l.b16 %v257
    %v412 = vunpack.c.l.b16 %v258
    %v413 = vunpack.c.l.b16 %v259
    %v414 = vunpack.c.l.b16 %v260
    %v415 = vunpack.c.l.b16 %v261
    %v416 = vunpack.c.l.b16 %v262
    %v417 = vunpack.c.l.b16 %v263
    %v418 = vunpack.c.l.b16 %v264
    %v419 = vunpack.c.l.b16 %v265
    %v420 = vpack.c.b16 %v405, %v404
    %v421 = vpack.c.b16 %v407, %v406
    %v422 = vpack.c.b16 %v409, %v408
    %v423 = vpack.c.b16 %v411, %v410
    %v424 = vpack.c.b16 %v413, %v412
    %v425 = vpack.c.b16 %v415, %v414
    %v426 = vpack.c.b16 %v417, %v416
    %v427 = vpack.c.b16 %v419, %v418
    %436 = vmatprep.subr.bf16.mxu0 0
    %437 = vmatpush1.bf16.msra.mxu0 %v427
    %438 = vmatprep.subr.bf16.mxu0 0
    %439 = vmatpush1.bf16.msra.mxu0 %v426
    %440 = vmatprep.subr.bf16.mxu0 0
    %441 = vmatpush1.bf16.msra.mxu0 %v425
    %442 = vmatprep.subr.bf16.mxu0 0
    %443 = vmatpush1.bf16.msra.mxu0 %v424
    %444 = vmatprep.subr.bf16.mxu0 0
    %445 = vmatpush1.bf16.msra.mxu0 %v423
    %446 = vmatprep.subr.bf16.mxu0 0
    %447 = vmatpush1.bf16.msra.mxu0 %v422
    %448 = vmatprep.subr.bf16.mxu0 0
    %449 = vmatpush1.bf16.msra.mxu0 %v421
    %450 = vmatprep.subr.bf16.mxu0 0
    %451 = vmatpush1.bf16.msra.mxu0 %v420
    %452 = vmatprep.subr.bf16.mxu0 0
    %453 = vmatpush2.bf16.msra.mxu0 0
    %454 = vmatprep.subr.bf16.mxu0 0
    %455 = vmatpush2.bf16.msra.mxu0 0
    %456 = vmatprep.subr.bf16.mxu0 0
    %457 = vmatpush2.bf16.msra.mxu0 0
    %458 = vmatprep.subr.bf16.mxu0 0
    %459 = vmatpush2.bf16.msra.mxu0 0
    %460 = vmatprep.subr.bf16.mxu0 0
    %461 = vmatpush2.bf16.msra.mxu0 0
    %462 = vmatprep.subr.bf16.mxu0 0
    %463 = vmatpush2.bf16.msra.mxu0 0
    %464 = vmatprep.subr.bf16.mxu0 0
    %465 = vmatpush2.bf16.msra.mxu0 0
    %466 = vmatprep.subr.bf16.mxu0 0
    %467 = vmatpush2.bf16.msra.mxu0 0
    %468 = vmatprep.mubr.f32.mxu0 0.0
    %469 = vmatmul.mubr.f32.gmra.mxu0 %v248
    %v470 = vpop.f32.mrf.mxu0
    %v471 = vadd.f32 %v387, %v470
    %v472 = vpop.f32.mrf.mxu0
    %473 = vdwg.mxu0
    %v474 = vmul.f32 %v268, %v268
    %v475 = vmul.f32 %v474, -0.5
    %v476 = vlog2.pop %v386
    %v477 = vmul.f32 %v476, 0.6931472
    %v478 = vsub.f32 %v475, %v477
    %v479 = vsub.f32 %v478, 0.9189385
    %v480 = vtanh.pop %v471
    %v481 = vtanh.pop %v480
    %v482 = vmul.f32 %v481, %v481
    %v483 = vsub.f32 1.0, %v482
    %v484 = vadd.f32 %v483, 1e-07
    %v485 = vlog2.pop %v484
    %v486 = vmul.f32 %v485, 0.6931472
    %v487 = vsub.f32 %v479, %v486
    %489 = vrot.lane.b32.xlu0 %v487, 64
    %v490 = vpop.permute.xlu0 %489
    %vm492 = vcmask 523264
    %v493 = vsel %vm492, %v480, %v490
    %494 = vst [vmem:[%s4] sm:$0xff] %v493
    // Predicated region
    $region18: #{policy_forward.1} parent=1 // pred_check
      _
    $region19: #{policy_forward.1} parent=1 // pred_check_branch
      %496 = sbr.rel (0) target = $region21
    $region20: #{policy_forward.1} parent=1 // pred_region
      _
    $region21: #{policy_forward.1} parent=1 // pred_fallthru
      _
    // Predicated region
    $region22: #{policy_forward.1} parent=1 // pred_check
      _
    $region23: #{policy_forward.1} parent=1 // pred_check_branch
      %498 = sbr.rel (0) target = $region25
    $region24: #{policy_forward.1} parent=1 // pred_region
      _
    $region25: #{policy_forward.1} parent=1 // pred_fallthru
      _
    %499 = vsyncpa [#allocation5], 1

</llo_original>
